<compile_context>
chip_gen: v7x
topology: tpu7x:2x2x1
jax: 0.10.0
libtpu: 0.0.40
codegen_flags: <defaults>
</compile_context>

<pallas_src>
import numpy as np
import jax
import jax.numpy as jnp
from jax.experimental import pallas as pl
from jax.experimental.pallas import tpu as pltpu


def _adaptive_pool_matrix(in_size: int, out_size: int) -> np.ndarray:
    """(out_size, in_size) matrix M with M[i, h] = 1/|R_i| for h in PyTorch's adaptive region R_i.

    R_i = [floor(i*in/out), ceil((i+1)*in/out)) — matches nn.AdaptiveAvgPool2d (handles
    overlapping / non-divisible regions exactly).
    """
    m = np.zeros((out_size, in_size), dtype=np.float32)
    for i in range(out_size):
        start = (i * in_size) // out_size
        end = -((-(i + 1) * in_size) // out_size)  # ceil((i+1)*in/out)
        m[i, start:end] = 1.0 / float(end - start)
    return m


def _pick_channel_tile(C: int, HW: int, itemsize: int) -> int:
    """Channel tile TC: always an exact divisor of C (no masking needed); a multiple of 8
    whenever possible so the (sublane) block dim satisfies the (8, 128) layout rule; sized
    to roughly 512 KiB per input block while keeping >= 2 reduction steps when possible."""
    if C % 8 != 0:
        return C  # whole-dim block — always layout-legal
    budget = max(8, (512 * 1024) // max(1, HW * itemsize))
    best = C
    for cand in range(8, C + 1, 8):
        if C % cand == 0 and cand <= budget and (C // cand) >= 2:
            best = cand  # largest passing candidate wins
    return best


def _sample_kernel(x_ref, pc_ref, o_ref, acc_ref):
    """Per (batch, channel-tile) step: upcast, square, channel-sum into a VMEM accumulator;
    on the last channel step apply the combined pooling matrix (one MXU matmul) and store."""
    k = pl.program_id(1)

    @pl.when(k == 0)
    def _():
        acc_ref[...] = jnp.zeros_like(acc_ref)

    x = x_ref[0].astype(jnp.float32)                        # (TC, HW) — upcast in-kernel
    acc_ref[...] += jnp.sum(x * x, axis=0, keepdims=True)   # (1, HW) sum of squares

    @pl.when(k == pl.num_programs(1) - 1)
    def _():
        # pooled_flat = (sum_c x_c^2) @ P_comb ; 1/C and 1/|region| are folded into P_comb.
        o_ref[0] = jnp.dot(acc_ref[...], pc_ref[...],
                           preferred_element_type=jnp.float32)  # (1, t_HW)


def _sample_one(f_s, t_H, t_W):
    """One feature map (N, C, H, W) -> (N, t_H*t_W)."""
    N, C, H, W = f_s.shape
    HW, t_HW = H * W, t_H * t_W
    itemsize = jnp.dtype(f_s.dtype).itemsize
    TC = _pick_channel_tile(C, HW, itemsize)
    nk = C // TC

    ph = _adaptive_pool_matrix(H, t_H)                 # (t_H, H)
    pw = _adaptive_pool_matrix(W, t_W)                 # (t_W, W)
    # pooled[n, i*t_W + j] = sum_{h,w} att[n, h*W + w] * ph[i, h] * pw[j, w];  fold 1/C.
    p_comb = jnp.asarray(np.kron(ph, pw).T / float(C))  # (HW, t_HW), f32

    # Free view of contiguous NCHW -> lane-dense flattened spatial axis; keep native dtype.
    x = f_s.reshape(N, C, HW)

    flops = 2 * N * C * HW + 2 * N * HW * t_HW
    bytes_accessed = N * C * HW * itemsize + HW * t_HW * 4 + N * t_HW * 4

    out = pl.pallas_call(
        _sample_kernel,
        out_shape=jax.ShapeDtypeStruct((N, 1, t_HW), jnp.float32),
        grid_spec=pltpu.PrefetchScalarGridSpec(
            num_scalar_prefetch=0,
            grid=(N, nk),
            in_specs=[
                pl.BlockSpec((1, TC, HW), lambda n, k: (n, k, 0)),
                pl.BlockSpec((HW, t_HW), lambda n, k: (0, 0)),
            ],
            out_specs=pl.BlockSpec((1, 1, t_HW), lambda n, k: (n, 0, 0)),
            scratch_shapes=[pltpu.VMEM((1, HW), jnp.float32)],
        ),
        compiler_params=pltpu.CompilerParams(
            dimension_semantics=("parallel", "arbitrary")),
        cost_estimate=pl.CostEstimate(flops=flops, transcendentals=0,
                                      bytes_accessed=bytes_accessed),
    )(x, p_comb)
    return out.reshape(N, t_HW)


def sample_forward(g_s, bs, t_shape):
    """Pallas implementation of Sample.forward.

    g_s: list of NCHW arrays (possibly different C/H/W/dtype per entry), bs == N.
    Returns (bs, len(g_s), t_H * t_W) in float32.
    """
    _, _, t_H, t_W = t_shape
    feats = [_sample_one(f_s, t_H, t_W) for f_s in g_s]
    return jnp.stack(feats, axis=1)


# ----- pure-JAX reference (mirrors the torch module) ----------------------------------
def _sample_ref(g_s, bs, t_shape):
    _, _, t_H, t_W = t_shape
    feats = []
    for f_s in g_s:
        N, C, H, W = f_s.shape
        att = jnp.mean(f_s.astype(jnp.float32) ** 2, axis=1)        # (N, H, W)
        ph = jnp.asarray(_adaptive_pool_matrix(H, t_H))
        pw = jnp.asarray(_adaptive_pool_matrix(W, t_W))
        pooled = jnp.einsum("ih,nhw,jw->nij", ph, att, pw,
                            precision=jax.lax.Precision.HIGHEST)    # (N, t_H, t_W)
        feats.append(pooled.reshape(bs, -1))
    return jnp.stack(feats, axis=1)


if __name__ == "__main__":
    key = jax.random.PRNGKey(0)
    k1, k2, k3, k4 = jax.random.split(key, 4)
    bs = 2
    t_shape = (bs, 4, 4, 4)  # teacher shape -> AdaptiveAvgPool2d((4, 4))
    g_s = [
        jax.random.normal(k1, (bs, 4, 16, 16), jnp.float32),
        jax.random.normal(k2, (bs, 8, 8, 8), jnp.float32),
        jax.random.normal(k3, (bs, 3, 10, 12), jnp.float32),                 # overlapping adaptive regions
        jax.random.normal(k4, (bs, 32, 14, 14), jnp.float32).astype(jnp.bfloat16),  # native bf16, channel-tiled
    ]

    out = jax.block_until_ready(sample_forward(g_s, bs, t_shape))
    ref = jax.block_until_ready(_sample_ref(g_s, bs, t_shape))

    assert out.shape == (bs, len(g_s), t_shape[2] * t_shape[3]), out.shape
    assert bool(jnp.all(jnp.isfinite(out)))
    assert jnp.allclose(out, ref, rtol=1e-4, atol=1e-4), (out, ref)
    print("KERNEL_OK")
</pallas_src>

<mosaic_0001>
module attributes {stable_mosaic.version = 11 : i64} {
  func.func @_sample_kernel(%arg0: i32, %arg1: i32, %arg2: memref<1x4x256xf32, #tpu.memory_space<vmem>>, %arg3: memref<256x16xf32, #tpu.memory_space<vmem>>, %arg4: memref<1x1x16xf32, #tpu.memory_space<vmem>>, %arg5: memref<1x256xf32, #tpu.memory_space<vmem>>) attributes {dimension_semantics = [#tpu.dimension_semantics<parallel>, #tpu.dimension_semantics<arbitrary>], iteration_bounds = array<i64: 2, 1>, scalar_prefetch = 0 : i64, scratch_operands = 1 : i64, tpu.core_type = #tpu.core_type<tc>, window_params = [{transform_indices = @transform_0, window_bounds = array<i64: 1, 4, 256>}, {pipeline_mode = #tpu.pipeline_mode<synchronous>, transform_indices = @transform_1, window_bounds = array<i64: 256, 16>}, {transform_indices = @transform_2, window_bounds = array<i64: 1, 1, 16>}]} {
    %c0_i32 = arith.constant 0 : i32
    %0 = arith.cmpi eq, %arg1, %c0_i32 : i32
    %1 = arith.extui %0 : i1 to i32
    %c0_i32_0 = arith.constant 0 : i32
    %2 = arith.cmpi ne, %1, %c0_i32_0 : i32
    scf.if %2 {
      %cst_9 = arith.constant 0.000000e+00 : f32
      %14 = vector.broadcast %cst_9 : f32 to vector<1x256xf32>
      %c0_10 = arith.constant 0 : index
      %c0_11 = arith.constant 0 : index
      %15 = vector.load %arg5[%c0_10, %c0_11] : memref<1x256xf32, #tpu.memory_space<vmem>>, vector<1x256xf32>
      tpu.vector_store %arg5[%c0_10, %c0_11], %14 {strides = array<i32>} : memref<1x256xf32, #tpu.memory_space<vmem>>, vector<1x256xf32>,
    } else {
    }
    %c0 = arith.constant 0 : index
    %c0_1 = arith.constant 0 : index
    %c0_2 = arith.constant 0 : index
    %3 = vector.load %arg2[%c0, %c0_1, %c0_2] : memref<1x4x256xf32, #tpu.memory_space<vmem>>, vector<1x4x256xf32>
    %4 = vector.shape_cast %3 : vector<1x4x256xf32> to vector<4x256xf32>
    %c0_3 = arith.constant 0 : index
    %c0_4 = arith.constant 0 : index
    %5 = vector.load %arg5[%c0_3, %c0_4] : memref<1x256xf32, #tpu.memory_space<vmem>>, vector<1x256xf32>
    %6 = arith.mulf %4, %4 : vector<4x256xf32>
    %cst = arith.constant dense<0.000000e+00> : vector<256xf32>
    %7 = vector.multi_reduction <add>, %6, %cst [0] : vector<4x256xf32> to vector<256xf32>
    %8 = vector.shape_cast %7 : vector<256xf32> to vector<1x256xf32>
    %9 = arith.addf %5, %8 : vector<1x256xf32>
    %c0_5 = arith.constant 0 : index
    %c0_6 = arith.constant 0 : index
    %10 = vector.load %arg5[%c0_5, %c0_6] : memref<1x256xf32, #tpu.memory_space<vmem>>, vector<1x256xf32>
    tpu.vector_store %arg5[%c0_5, %c0_6], %9 {strides = array<i32>} : memref<1x256xf32, #tpu.memory_space<vmem>>, vector<1x256xf32>,
    %c0_i32_7 = arith.constant 0 : i32
    %11 = arith.cmpi eq, %arg1, %c0_i32_7 : i32
    %12 = arith.extui %11 : i1 to i32
    %c0_i32_8 = arith.constant 0 : i32
    %13 = arith.cmpi ne, %12, %c0_i32_8 : i32
    scf.if %13 {
      %c0_9 = arith.constant 0 : index
      %c0_10 = arith.constant 0 : index
      %14 = vector.load %arg5[%c0_9, %c0_10] : memref<1x256xf32, #tpu.memory_space<vmem>>, vector<1x256xf32>
      %c0_11 = arith.constant 0 : index
      %c0_12 = arith.constant 0 : index
      %15 = vector.load %arg3[%c0_11, %c0_12] : memref<256x16xf32, #tpu.memory_space<vmem>>, vector<256x16xf32>
      %cst_13 = arith.constant dense<0.000000e+00> : vector<1x16xf32>
      %16 = tpu.matmul %14, %15, %cst_13 {dimension_numbers = #tpu.dot_dimension_numbers<[1], [0], [0], [1], [0, 0, 1, 1], [], []>} : vector<1x256xf32>, vector<256x16xf32>, vector<1x16xf32> -> vector<1x16xf32>
      %c0_14 = arith.constant 0 : index
      %c0_15 = arith.constant 0 : index
      %c0_16 = arith.constant 0 : index
      %17 = vector.load %arg4[%c0_14, %c0_15, %c0_16] : memref<1x1x16xf32, #tpu.memory_space<vmem>>, vector<1x1x16xf32>
      %18 = vector.shape_cast %17 : vector<1x1x16xf32> to vector<1x16xf32>
      %19 = vector.shape_cast %16 : vector<1x16xf32> to vector<1x1x16xf32>
      tpu.vector_store %arg4[%c0_14, %c0_15, %c0_16], %19 {strides = array<i32>} : memref<1x1x16xf32, #tpu.memory_space<vmem>>, vector<1x1x16xf32>,
    } else {
    }
    return
  }
  func.func @transform_0(%arg0: i32, %arg1: i32) -> (i32, i32, i32) {
    %c0_i32 = arith.constant 0 : i32
    %c0_i32_0 = arith.constant 0 : i32
    return %arg0, %arg1, %c0_i32 : i32, i32, i32
  }
  func.func @transform_1(%arg0: i32, %arg1: i32) -> (i32, i32) {
    %c0_i32 = arith.constant 0 : i32
    %c0_i32_0 = arith.constant 0 : i32
    %c0_i32_1 = arith.constant 0 : i32
    return %c0_i32, %c0_i32_0 : i32, i32
  }
  func.func @transform_2(%arg0: i32, %arg1: i32) -> (i32, i32, i32) {
    %c0_i32 = arith.constant 0 : i32
    %c0_i32_0 = arith.constant 0 : i32
    %c0_i32_1 = arith.constant 0 : i32
    return %arg0, %c0_i32, %c0_i32_0 : i32, i32, i32
  }
}

</mosaic_0001>

<llo_original>
// kernel: tpu_custom_call.1
$region0: #{tpu_custom_call.1}
  #allocation0 [shape = 'u32[]', space=smem, size = 0x4, offset = 0x4, fixed_abs, tag = 'smem constant byte address 0x4 - core index']
  #allocation1 [shape = 'u32[144,128]{1,0:T(1,128)}', space=vmem, size = 0x12000, scoped, tag = 'internal scratch']
  #allocation2 [shape = 'f32[1,256]{1,0:T(1,128)}', space=vmem, size = 0x400, scoped, tag = 'scratch operand']
  %s0 = inlined_call_operand.vmem [shape: f32[2,4,256], index: 0, kind: input, shape index: {}]
  %s1 = inlined_call_operand.vmem [shape: f32[256,16], index: 1, kind: input, shape index: {}]
  %s2 = inlined_call_operand.hbm [shape: f32[2,1,16], index: 2, kind: output, shape index: {}]
  %s3 = sld [smem:[#allocation0]]
  $region49: #{tpu_custom_call.1} parent=0
    _
  %s5 = ssub.s32 1, %s3
  %s6 = scalar_select 0, %s5, %s3
  $region1: #{tpu_custom_call.1} parent=0
    #allocation3 [shape = 'u8[1024]{0}', space=vmem, size = 0x400, scoped, tag = 'output window, operand 0']
    #allocation4 [shape = 's32[2]{0}', space=sflag, size = 0x8, scoped, tag = 'scoped memory for tpu_custom_call.1']
    %7 = vsyncpa [#allocation4], 0
    %s8 = scalar_lea.sflag [#allocation4], 1
    %9 = vsyncpa %s8, 0
    loop: start=0, step=1, limit=4
    $region2: #{tpu_custom_call.1} parent=1 // loop_pre_header
      _
    $region3: #{tpu_custom_call.1} parent=1 // loop_header
      %s11 = sphi 0, %s15
      %p12 = scmp.ge.s32.totalorder %s11, 4
      %s18 = sphi 0, %s30
      %s19 = sphi 0, %s26
      %s20 = sphi 0, %s18
      %s21 = sphi 0, %s19
      %s22 = sphi 0, %s20
      %s23 = sphi 0, %s21
      %s35 = sphi 0, %s37
      %s38 = sphi 0, %s35
      %s39 = sphi 0, %s38
      %s55 = sphi 0, %s39
      %s59 = sphi 0, %s59
      %s61 = sphi 0, %s59
      %s62 = sphi 0, %s61
      %s76 = sphi 0, %s62
      %s82 = sphi 0, %s84
      %s85 = sphi 0, %s82
      %s86 = sphi 0, %s85
      %s102 = sphi 0, %s86
    $region4: #{tpu_custom_call.1} parent=1 // loop_header_branch
      %14 = sbr.rel (%p12) target = $region8
    $region5: #{tpu_custom_call.1} parent=1 // loop_body
      %s16 = ssub.s32 %s11, 1
      %s17 = ssub.s32 %s11, 2
      %s24 = sadd.s32 1, %s19
      %p25 = scmp.ge.s32.totalorder %s24, 1
      %s26 = scalar_select %p25, 0, %s24
      %s27 = sadd.s32 1, %s18
      %s28 = scalar_select %p25, %s27, %s18
      %p29 = scmp.ge.s32.totalorder %s28, 2
      %s30 = scalar_select %p29, 0, %s28
      %s31 = ssub.s32 %s18, %s30
      %s32 = ssub.s32 %s19, %s26
      %s33 = sor.u32 %s31, %s32
      %p34 = scmp.eq.s32.totalorder %s33, 0
      %s36 = sadd.s32 %s35, 1
      %s37 = scalar_select %p34, %s35, %s36
      %p40 = pneg %p34
      %p41 = scmp.eq.s32.totalorder %s11, 1
      %p42 = por %p40, %p41
      %p43 = scmp.ne.s32.totalorder %s35, %s38
      %p44 = scmp.eq.s32.totalorder %s11, 0
      %p45 = por %p43, %p44
      %p46 = scmp.ne.s32.totalorder %s35, %s38
      %p47 = scmp.eq.s32.totalorder %s16, 1
      %p48 = por %p46, %p47
      %p49 = scmp.ne.s32.totalorder %s38, %s39
      %p50 = scmp.eq.s32.totalorder %s16, 0
      %p51 = por %p49, %p50
      %p52 = scmp.ne.s32.totalorder %s38, %s39
      %p53 = scmp.eq.s32.totalorder %s17, 1
      %p54 = por %p52, %p53
      %p56 = scmp.ne.s32.totalorder %s39, %s55
      %p57 = scmp.eq.s32.totalorder %s17, 0
      %p58 = por %p56, %p57
      %s60 = sadd.s32 %s59, 1
      %p63 = scmp.eq.s32.totalorder %s11, 1
      %p64 = scmp.ne.s32.totalorder %s59, %s61
      %p65 = scmp.eq.s32.totalorder %s11, 0
      %p66 = por %p64, %p65
      %p67 = scmp.ne.s32.totalorder %s59, %s61
      %p68 = scmp.eq.s32.totalorder %s16, 1
      %p69 = por %p67, %p68
      %p70 = scmp.ne.s32.totalorder %s61, %s62
      %p71 = scmp.eq.s32.totalorder %s16, 0
      %p72 = por %p70, %p71
      %p73 = scmp.ne.s32.totalorder %s61, %s62
      %p74 = scmp.eq.s32.totalorder %s17, 1
      %p75 = por %p73, %p74
      %p77 = scmp.ne.s32.totalorder %s62, %s76
      %p78 = scmp.eq.s32.totalorder %s17, 0
      %p79 = por %p77, %p78
      %s80 = ssub.s32 %s18, %s30
      %p81 = scmp.eq.s32.totalorder %s80, 0
      %s83 = sadd.s32 %s82, 1
      %s84 = scalar_select %p81, %s82, %s83
      %p87 = pneg %p81
      %p88 = scmp.eq.s32.totalorder %s11, 1
      %p89 = por %p87, %p88
      %p90 = scmp.ne.s32.totalorder %s82, %s85
      %p91 = scmp.eq.s32.totalorder %s11, 0
      %p92 = por %p90, %p91
      %p93 = scmp.ne.s32.totalorder %s82, %s85
      %p94 = scmp.eq.s32.totalorder %s16, 1
      %p95 = por %p93, %p94
      %p96 = scmp.ne.s32.totalorder %s85, %s86
      %p97 = scmp.eq.s32.totalorder %s16, 0
      %p98 = por %p96, %p97
      %p99 = scmp.ne.s32.totalorder %s85, %s86
      %p100 = scmp.eq.s32.totalorder %s17, 1
      %p101 = por %p99, %p100
      %p103 = scmp.ne.s32.totalorder %s86, %s102
      %p104 = scmp.eq.s32.totalorder %s17, 0
      %p105 = por %p103, %p104
      %p106 = scmp.le.s32.totalorder 1, %s11
      %p107 = scmp.lt.s32.totalorder %s11, 3
      %p108 = pnand %p106, %p107
      %p109 = pneg %p108
      // Predicated region
      $region9: #{tpu_custom_call.1} parent=5 // pred_check
        _
      $region10: #{tpu_custom_call.1} parent=5 // pred_check_branch
        %111 = sbr.rel (%p108) target = $region12
      $region11: #{tpu_custom_call.1} parent=5 // pred_region
        %s112 = ssub.s32 %s11, 1
        // Predicated region
        $region13: #{tpu_custom_call.1} parent=11 // pred_check
          %p113 = pneg %p72
        $region14: #{tpu_custom_call.1} parent=11 // pred_check_branch
          %115 = sbr.rel (%p113) target = $region16
        $region15: #{tpu_custom_call.1} parent=11 // pred_region
          _
        $region16: #{tpu_custom_call.1} parent=11 // pred_fallthru
          _
      $region12: #{tpu_custom_call.1} parent=5 // pred_fallthru
        _
      %p116 = scmp.lt.s32.totalorder %s11, 2
      // Predicated region
      $region17: #{tpu_custom_call.1} parent=5 // pred_check
        %p117 = pneg %p116
      $region18: #{tpu_custom_call.1} parent=5 // pred_check_branch
        %119 = sbr.rel (%p117) target = $region20
      $region19: #{tpu_custom_call.1} parent=5 // pred_region
        // Predicated region
        $region21: #{tpu_custom_call.1} parent=19 // pred_check
          %p120 = pneg %p45
        $region22: #{tpu_custom_call.1} parent=19 // pred_check_branch
          %122 = sbr.rel (%p120) target = $region24
        $region23: #{tpu_custom_call.1} parent=19 // pred_region
          %p123 = scmp.lt.s32.totalorder %s18, 1
          %s124 = scalar_select %p123, %s18, 1
          %p125 = scmp.lt.s32.totalorder %s19, 0
          %s126 = scalar_select %p125, %s19, 0
          %s127 = smul.addr %s126, 2
          %s128 = smul.addr %s124, 2
          %s129 = sadd.s32 %s127, %s128
          %s130 = smul.addr %s129, 4
          %s131 = scalar_lea.vmem %s0, %s130
        $region24: #{tpu_custom_call.1} parent=19 // pred_fallthru
          _
      $region20: #{tpu_custom_call.1} parent=5 // pred_fallthru
        _
      %p132 = scmp.le.s32.totalorder 1, %s11
      %p133 = scmp.lt.s32.totalorder %s11, 3
      %p134 = pnand %p132, %p133
      %p135 = pneg %p134
      // Predicated region
      $region25: #{tpu_custom_call.1} parent=5 // pred_check
        _
      $region26: #{tpu_custom_call.1} parent=5 // pred_check_branch
        %137 = sbr.rel (%p134) target = $region28
      $region27: #{tpu_custom_call.1} parent=5 // pred_region
        %s138 = ssub.s32 %s11, 1
        %p139 = scmp.lt.s32.totalorder %s20, 1
        %s140 = scalar_select %p139, %s20, 1
        %p141 = scmp.lt.s32.totalorder %s21, 0
        %s142 = scalar_select %p141, %s21, 0
        %s143 = smul.addr %s142, 2
        %s144 = smul.addr %s140, 2
        %s145 = sadd.s32 %s143, %s144
        %s146 = smul.addr %s145, 4
        %s147 = scalar_lea.vmem %s0, %s146
        %p148 = pneg %p51
        %p149 = pneg %p48
        %p150 = pneg %p72
        %p151 = pneg %p69
        %p152 = pneg %p98
        %p153 = pneg %p95
        %s154 = sand.u32 %s85, 1
        %s155 = scalar_lea.sflag [#allocation4], %s154
        %s156 = sand.u32 %s85, 1
        %s157 = scalar_lea.vmem [#allocation3], %s156
        %p158 = scmp.lt.s32.totalorder %s20, 1
        %s159 = scalar_select %p158, %s20, 1
        %p160 = scmp.lt.s32.totalorder %s21, 0
        %s161 = scalar_select %p160, %s21, 0
        %s162 = smul.addr %s161, 2
        %s163 = smul.addr %s159, 2
        %s164 = sadd.s32 %s162, %s163
        %s165 = smul.addr %s164, 4
        %s166 = scalar_lea.vmem %s0, %s165
        %p167 = scmp.eq.s32.totalorder %s21, 0
        // Predicated region
        $region29: #{tpu_custom_call.1} parent=27 // pred_check
          %p168 = pneg %p167
        $region30: #{tpu_custom_call.1} parent=27 // pred_check_branch
          %170 = sbr.rel (%p168) target = $region32
        $region31: #{tpu_custom_call.1} parent=27 // pred_region
          %v171 = vlaneseq
          %vm172 = vcmp.ge.s32.totalorder %v171, 0
          %vm173 = vcmp.lt.s32.totalorder %v171, 256
          %vm174 = vmand %vm172, %vm173
          %175 = vst.msk [vmem:[#allocation2] sm:$0x3] %vm174, 0.0
        $region32: #{tpu_custom_call.1} parent=27 // pred_fallthru
          _
        %v176 = vld [vmem:[%s166] sm:$0xff]
        %v177 = vld [vmem:[#allocation2] sm:$0x3]
        %v178 = vmul.f32 %v176, %v176
        %v180 = vcombine.high %v178, %v178
        %vm182 = vcmask 1043456
        %v183 = vsel %vm182, %v178, 0.0
        %v184 = vrot.slane %v183, 4
        %v185 = vadd.f32 %v183, %v184
        %v186 = vrot.slane %v185, 2
        %v187 = vadd.f32 %v185, %v186
        %v188 = vrot.slane %v187, 1
        %v189 = vadd.f32 %v187, %v188
        %v190 = vsel %vm182, %v180, 0.0
        %v191 = vrot.slane %v190, 4
        %v192 = vadd.f32 %v190, %v191
        %v193 = vrot.slane %v192, 2
        %v194 = vadd.f32 %v192, %v193
        %v195 = vrot.slane %v194, 1
        %v196 = vadd.f32 %v194, %v195
        %v199 = vcombine.low %v189, %v196
        %v201 = vunpack.c.l.s4 1966171168
        %v202 = vunpack.c.0.s8 %v201
        %v203 = vlaneseq
        %v204 = vshrl.u32 %v203, 7
        %v205 = vsub.s32 %v202, %v204
        %v206 = vrot.slane %v199, %v205
        %v208 = vunpack.c.l.s4 1966171168
        %v209 = vunpack.c.0.s8 %v208
        %v210 = vlaneseq
        %v211 = vshrl.u32 %v210, 7
        %v212 = vsub.s32 %v209, %v211
        %v213 = vrot.slane %v206, %v212
        %v215 = vadd.f32 %v177, %v213
        %v216 = vlaneseq
        %vm217 = vcmp.ge.s32.totalorder %v216, 0
        %vm218 = vcmp.lt.s32.totalorder %v216, 256
        %vm219 = vmand %vm217, %vm218
        %220 = vst.msk [vmem:[#allocation2] sm:$0x3] %vm219, %v215
        // Predicated region
        $region33: #{tpu_custom_call.1} parent=27 // pred_check
          %p221 = pneg %p167
        $region34: #{tpu_custom_call.1} parent=27 // pred_check_branch
          %223 = sbr.rel (%p221) target = $region36
        $region35: #{tpu_custom_call.1} parent=27 // pred_region
          %v224 = vld [vmem:[#allocation2] sm:$0x3]
          %v225 = vld [vmem:[%s1] sm:$0xff]
          %v226 = vld [vmem:[%s1 + $0x8] sm:$0xff]
          %v227 = vld [vmem:[%s1 + $0x10] sm:$0xff]
          %v228 = vld [vmem:[%s1 + $0x18] sm:$0xff]
          %v229 = vld [vmem:[%s1 + $0x20] sm:$0xff]
          %v230 = vld [vmem:[%s1 + $0x28] sm:$0xff]
          %v231 = vld [vmem:[%s1 + $0x30] sm:$0xff]
          %v232 = vld [vmem:[%s1 + $0x38] sm:$0xff]
          %v233 = vld [vmem:[%s1 + $0x40] sm:$0xff]
          %v234 = vld [vmem:[%s1 + $0x48] sm:$0xff]
          %v235 = vld [vmem:[%s1 + $0x50] sm:$0xff]
          %v236 = vld [vmem:[%s1 + $0x58] sm:$0xff]
          %v237 = vld [vmem:[%s1 + $0x60] sm:$0xff]
          %v238 = vld [vmem:[%s1 + $0x68] sm:$0xff]
          %v239 = vld [vmem:[%s1 + $0x70] sm:$0xff]
          %v240 = vld [vmem:[%s1 + $0x78] sm:$0xff]
          %v241 = vld [vmem:[%s1 + $0x80] sm:$0xff]
          %v242 = vld [vmem:[%s1 + $0x88] sm:$0xff]
          %v243 = vld [vmem:[%s1 + $0x90] sm:$0xff]
          %v244 = vld [vmem:[%s1 + $0x98] sm:$0xff]
          %v245 = vld [vmem:[%s1 + $0xa0] sm:$0xff]
          %v246 = vld [vmem:[%s1 + $0xa8] sm:$0xff]
          %v247 = vld [vmem:[%s1 + $0xb0] sm:$0xff]
          %v248 = vld [vmem:[%s1 + $0xb8] sm:$0xff]
          %v249 = vld [vmem:[%s1 + $0xc0] sm:$0xff]
          %v250 = vld [vmem:[%s1 + $0xc8] sm:$0xff]
          %v251 = vld [vmem:[%s1 + $0xd0] sm:$0xff]
          %v252 = vld [vmem:[%s1 + $0xd8] sm:$0xff]
          %v253 = vld [vmem:[%s1 + $0xe0] sm:$0xff]
          %v254 = vld [vmem:[%s1 + $0xe8] sm:$0xff]
          %v255 = vld [vmem:[%s1 + $0xf0] sm:$0xff]
          %v256 = vld [vmem:[%s1 + $0xf8] sm:$0xff]
          %v258 = vlaneseq
          %v259 = vshrl.u32 %v258, 7
          %v260 = vsub.s32 0, %v259
          %v261 = vrot.slane %v224, %v260
          %v262 = vlaneseq
          %v263 = vshrl.u32 %v262, 7
          %v264 = vsub.s32 1, %v263
          %v265 = vrot.slane %v224, %v264
          %268 = vmatprep.subr.mxu0 0.0
          %269 = vmatpush1.msra.mxu0 %v225
          %270 = vmatprep.subr.mxu0 0.0
          %271 = vmatpush1.msra.mxu0 %v226
          %272 = vmatprep.subr.mxu0 0.0
          %273 = vmatpush1.msra.mxu0 %v227
          %274 = vmatprep.subr.mxu0 0.0
          %275 = vmatpush1.msra.mxu0 %v228
          %276 = vmatprep.subr.mxu0 0.0
          %277 = vmatpush1.msra.mxu0 %v229
          %278 = vmatprep.subr.mxu0 0.0
          %279 = vmatpush1.msra.mxu0 %v230
          %280 = vmatprep.subr.mxu0 0.0
          %281 = vmatpush1.msra.mxu0 %v231
          %282 = vmatprep.subr.mxu0 0.0
          %283 = vmatpush1.msra.mxu0 %v232
          %284 = vmatprep.subr.mxu0 0.0
          %285 = vmatpush1.msra.mxu0 %v233
          %286 = vmatprep.subr.mxu0 0.0
          %287 = vmatpush1.msra.mxu0 %v234
          %288 = vmatprep.subr.mxu0 0.0
          %289 = vmatpush1.msra.mxu0 %v235
          %290 = vmatprep.subr.mxu0 0.0
          %291 = vmatpush1.msra.mxu0 %v236
          %292 = vmatprep.subr.mxu0 0.0
          %293 = vmatpush1.msra.mxu0 %v237
          %294 = vmatprep.subr.mxu0 0.0
          %295 = vmatpush1.msra.mxu0 %v238
          %296 = vmatprep.subr.mxu0 0.0
          %297 = vmatpush1.msra.mxu0 %v239
          %298 = vmatprep.subr.mxu0 0.0
          %299 = vmatpush1.msra.mxu0 %v240
          %300 = vmatprep.subr.mxu0 0.0
          %301 = vmatpush1.msra.mxu0 %v241
          %302 = vmatprep.subr.mxu0 0.0
          %303 = vmatpush1.msra.mxu0 %v242
          %304 = vmatprep.subr.mxu0 0.0
          %305 = vmatpush1.msra.mxu0 %v243
          %306 = vmatprep.subr.mxu0 0.0
          %307 = vmatpush1.msra.mxu0 %v244
          %308 = vmatprep.subr.mxu0 0.0
          %309 = vmatpush1.msra.mxu0 %v245
          %310 = vmatprep.subr.mxu0 0.0
          %311 = vmatpush1.msra.mxu0 %v246
          %312 = vmatprep.subr.mxu0 0.0
          %313 = vmatpush1.msra.mxu0 %v247
          %314 = vmatprep.subr.mxu0 0.0
          %315 = vmatpush1.msra.mxu0 %v248
          %316 = vmatprep.subr.mxu0 0.0
          %317 = vmatpush1.msra.mxu0 %v249
          %318 = vmatprep.subr.mxu0 0.0
          %319 = vmatpush1.msra.mxu0 %v250
          %320 = vmatprep.subr.mxu0 0.0
          %321 = vmatpush1.msra.mxu0 %v251
          %322 = vmatprep.subr.mxu0 0.0
          %323 = vmatpush1.msra.mxu0 %v252
          %324 = vmatprep.subr.mxu0 0.0
          %325 = vmatpush1.msra.mxu0 %v253
          %326 = vmatprep.subr.mxu0 0.0
          %327 = vmatpush1.msra.mxu0 %v254
          %328 = vmatprep.subr.mxu0 0.0
          %329 = vmatpush1.msra.mxu0 %v255
          %330 = vmatprep.subr.mxu0 0.0
          %331 = vmatpush1.msra.mxu0 %v256
          %332 = vmatprep.mubr.f32.mxu0 %v265
          %333 = vmatmul.mubr.f32.gmra.mrb[0].mxu0 %v261
          %v334 = vpop.f32.mrb[0].mxu0
          %v335 = vadd.f32 0.0, %v334
          %v336 = vpop.f32.mrb[0].mxu0
          %337 = vdwg.mxu0
          %vm338 = vcmask 122880
          %339 = vst.msk [vmem:[%s157] sm:$0x1] %vm338, %v335
        $region36: #{tpu_custom_call.1} parent=27 // pred_fallthru
          _
        %s340 = sand.u32 %s85, 1
        %s341 = scalar_lea.sflag [#allocation4], %s340
        %s342 = sand.u32 %s85, 1
        %s343 = scalar_lea.vmem [#allocation3], %s342
        // Predicated region
        $region37: #{tpu_custom_call.1} parent=27 // pred_check
          %p344 = pneg %p95
        $region38: #{tpu_custom_call.1} parent=27 // pred_check_branch
          %346 = sbr.rel (%p344) target = $region40
        $region39: #{tpu_custom_call.1} parent=27 // pred_region
          %s348 = ssub.s32 16, 16
          %349 = vsyncadd %s341, %s348
          %s350 = smul.addr %s20, 16
          %s351 = scalar_lea.hbm %s2, %s350
          %s353 = sshll.u32 %s343, 4
          %s354 = int_to_ptr.vmem [resolvable:$true] %s353
          %356 = dma.vmem_to_hbm [thread:$0]  %s354, 16, %s351, %s341
        $region40: #{tpu_custom_call.1} parent=27 // pred_fallthru
          _
      $region28: #{tpu_custom_call.1} parent=5 // pred_fallthru
        _
      %p357 = scmp.le.s32.totalorder 2, %s11
      // Predicated region
      $region41: #{tpu_custom_call.1} parent=5 // pred_check
        %p358 = pneg %p357
      $region42: #{tpu_custom_call.1} parent=5 // pred_check_branch
        %360 = sbr.rel (%p358) target = $region44
      $region43: #{tpu_custom_call.1} parent=5 // pred_region
        %s361 = ssub.s32 %s11, 2
        // Predicated region
        $region45: #{tpu_custom_call.1} parent=43 // pred_check
          %p362 = pneg %p101
        $region46: #{tpu_custom_call.1} parent=43 // pred_check_branch
          %364 = sbr.rel (%p362) target = $region48
        $region47: #{tpu_custom_call.1} parent=43 // pred_region
          %s365 = sand.u32 %s86, 1
          %s366 = scalar_lea.sflag [#allocation4], %s365
          %s367 = sand.u32 %s86, 1
          %s368 = scalar_lea.vmem [#allocation3], %s367
          %369 = dma.done %s366, 16
        $region48: #{tpu_custom_call.1} parent=43 // pred_fallthru
          _
      $region44: #{tpu_custom_call.1} parent=5 // pred_fallthru
        _
    $region6: #{tpu_custom_call.1} parent=1 // loop_footer
      %s15 = sadd.s32 1, %s11
    $region7: #{tpu_custom_call.1} parent=1 // loop_footer_branch
      %10 = sbr.rel target = $region3
    $region8: #{tpu_custom_call.1} parent=1 // loop_exit
      _
    %370 = vsyncpa [#allocation4], 1
    %s371 = scalar_lea.sflag [#allocation4], 1
    %372 = vsyncpa %s371, 1

</llo_original>
